<compile_context>
chip_gen: v6e
topology: v6e:2x2x1
jax: 0.10.0
libtpu: 0.0.40
codegen_flags: <defaults>
</compile_context>

<pallas_src>
import functools

import jax
import jax.numpy as jnp
from jax import lax
from jax.experimental import pallas as pl
from jax.experimental.pallas import tpu as pltpu
import numpy as np

EPS = 1e-5  # nn.InstanceNorm2d default


# ----------------------------------------------------------------------------
# Hardware queries (heuristic fallbacks keep this working on any TPU backend).
# ----------------------------------------------------------------------------
def _device_kind():
    try:
        return jax.devices()[0].device_kind.lower()
    except Exception:
        return ""


@functools.lru_cache(maxsize=None)
def _num_tensorcores():
    try:
        info = pltpu.get_tpu_info()
        for name in ("num_cores", "core_count", "num_tensorcores",
                     "num_tensor_cores", "tensor_core_count"):
            v = getattr(info, name, None)
            if isinstance(v, (int, np.integer)) and 0 < int(v) <= 16:
                return int(v)
    except Exception:
        pass
    kind = _device_kind()
    # Chips exposing 2 TensorCores per device to a "parallel" grid dimension.
    return 2 if any(t in kind for t in ("v4", "v5p", "v7")) else 1


@functools.lru_cache(maxsize=None)
def _mxu_rows():
    kind = _device_kind()
    if "v5e" in kind or "v5 lite" in kind or "v5lite" in kind:
        return 128       # 128x128 MXU
    return 256           # v6e / v7x: 256x256 MXU


@functools.lru_cache(maxsize=None)
def _vmem_capacity_bytes():
    try:
        info = pltpu.get_tpu_info()
        for name in ("vmem_capacity_bytes", "vmem_size_bytes", "vmem_bytes"):
            v = getattr(info, name, None)
            if isinstance(v, (int, np.integer)) and int(v) > 0:
                return int(v)
    except Exception:
        pass
    return 64 << 20       # conservative default: v7x per-TC VMEM


@functools.lru_cache(maxsize=None)
def _conv_mask_dtype():
    kind = _device_kind()
    # bf16 VALU exists on v6e / v7x: do the tap-mask multiply in bf16 there.
    if "v6" in kind or "v7" in kind:
        return jnp.bfloat16
    return jnp.float32


# ----------------------------------------------------------------------------
# Conv-as-lane-rolls helpers.
# ----------------------------------------------------------------------------
def _tap_offsets():
    # tap t = kh*3 + kw  <->  (dy, dx) = (kh-1, kw-1); matches PyTorch
    # cross-correlation with padding=1.
    return [(dy, dx) for dy in (-1, 0, 1) for dx in (-1, 0, 1)]


def _make_tap_masks(H, W, HWp, dtype):
    """mask[t, h*W+w] = 1 iff source pixel (h+dy, w+dx) is inside the image.
    Pad columns (p >= H*W) are 0 for every tap."""
    m = np.zeros((9, HWp), np.float32)
    for t, (dy, dx) in enumerate(_tap_offsets()):
        for h in range(H):
            if not 0 <= h + dy < H:
                continue
            for w in range(W):
                if 0 <= w + dx < W:
                    m[t, h * W + w] = 1.0
    return jnp.asarray(m, dtype=dtype)


def _block_diag_taps(w, Nb):
    """(C,C,3,3) PyTorch weight -> (Nb*C, 9*Nb*C) bf16 matrix that acts on the
    stacked rolled activations (block-diagonal over the Nb packed images)."""
    C = w.shape[0]
    taps = jnp.transpose(w, (2, 3, 0, 1)).reshape(9, C, C)      # (t, o, i)
    eye = jnp.eye(Nb, dtype=w.dtype)
    blk = jnp.einsum('toi,nm->notmi', taps, eye)                # (n, o, t, m, i)
    return blk.reshape(Nb * C, 9 * Nb * C).astype(jnp.bfloat16)


def _step_vmem_bytes(R, HWp, mask_itemsize):
    """Rough per-grid-step VMEM footprint in bytes."""
    io = 2 * (2 * R * HWp * 4)          # double-buffered x and out f32 blocks
    scratch = 9 * R * HWp * 2           # (9R, HWp) bf16 stacking scratch
    params = 9 * HWp * mask_itemsize + 2 * (R * 9 * R * 2) + 4 * R * 4
    return io + scratch + params


def _pick_nb(N, C, HWp, num_cores, target_rows, vmem_budget, mask_itemsize):
    """Images packed per grid step.  Priorities:
      1. keep G = N/Nb a multiple of the TensorCore count (no idle TC),
      2. fill the MXU M dimension (R -> target_rows),
      3. keep R aligned to the 16-row packed bf16 tile,
      4. once the MXU is full, prefer MORE grid steps (pipelining, less VMEM)."""
    cands = [nb for nb in range(1, N + 1)
             if N % nb == 0
             and _step_vmem_bytes(nb * C, HWp, mask_itemsize) <= vmem_budget]
    if not cands:
        cands = [1]

    def score(nb):
        R, G = nb * C, N // nb
        core_ok = 1 if G % num_cores == 0 else 0
        mxu_fill = min(R, target_rows)
        align = 2 if R % 16 == 0 else (1 if R % 8 == 0 else 0)
        return (core_ok, mxu_fill, align, -nb)

    return max(cands, key=score)


# ----------------------------------------------------------------------------
# Kernel.
# ----------------------------------------------------------------------------
def _residual_block_kernel(x_ref, m_ref, wk1_ref, wk2_ref,
                           g1_ref, b1_ref, g2_ref, b2_ref, o_ref,
                           stk_ref, *, shifts, inv_hw, r):
    x = x_ref[0]                        # (R, HWp) f32, R = Nb*C
    mask = m_ref[...]                   # (9, HWp) f32 (v5e) or bf16 (v6e/v7x)

    def conv3x3(inp, wk_ref):
        # 9 lane rotations (XLU) of the flattened image, boundary-masked, each
        # written straight into the reused bf16 stacking scratch at sublane
        # offset t*R; then ONE MXU matmul (R, 9R) @ (9R, HWp), f32 accumulate.
        inp_c = inp.astype(mask.dtype)
        for t, s in enumerate(shifts):            # static unroll over 9 taps
            rolled = pltpu.roll(inp_c, shift=s, axis=1) if s else inp_c
            piece = rolled * mask[t:t + 1, :]
            stk_ref[t * r:(t + 1) * r, :] = piece.astype(stk_ref.dtype)
        return jnp.dot(wk_ref[...], stk_ref[...],
                       preferred_element_type=jnp.float32)

    def instance_norm(y, gamma, beta):
        # Single-pass stats + fused affine; pad columns of y are exactly 0, so
        # dividing the sums by the true HW gives the un-padded statistics.
        s1 = jnp.sum(y, axis=-1, keepdims=True)
        s2 = jnp.sum(y * y, axis=-1, keepdims=True)
        mean = s1 * inv_hw
        var = jnp.maximum(s2 * inv_hw - mean * mean, 0.0)   # cancellation guard
        scale = gamma * lax.rsqrt(var + EPS)
        bias = beta - mean * scale
        return y * scale + bias

    y = conv3x3(x, wk1_ref)
    y = jnp.maximum(instance_norm(y, g1_ref[...], b1_ref[...]), 0.0)
    y = conv3x3(y, wk2_ref)
    y = instance_norm(y, g2_ref[...], b2_ref[...])
    o_ref[0] = x + y


@jax.jit
def residual_block(x_nchw, w1, w2, g1, b1, g2, b2):
    """x_nchw: (N, C, H, W) f32.  w1/w2: (C, C, 3, 3).  g*/b*: (C,)."""
    N, C, H, W = x_nchw.shape
    HW = H * W
    HWp = ((HW + 127) // 128) * 128      # lane-dense last dim

    num_cores = _num_tensorcores()
    target_rows = _mxu_rows()
    mask_dtype = _conv_mask_dtype()
    mask_isize = 2 if mask_dtype == jnp.bfloat16 else 4
    cap = _vmem_capacity_bytes()
    budget = (cap * 3) // 5              # headroom for compiler-internal scratch

    Nb = _pick_nb(N, C, HWp, num_cores, target_rows, budget, mask_isize)
    G, R = N // Nb, Nb * C

    x = x_nchw.reshape(N, C, HW)
    if HWp != HW:
        x = jnp.pad(x, ((0, 0), (0, 0), (0, HWp - HW)))
    x = x.reshape(G, R, HWp)             # row n_local*C + c inside each block

    mask = _make_tap_masks(H, W, HWp, mask_dtype)       # (9, HWp)
    wk1 = _block_diag_taps(w1, Nb)                      # (R, 9R) bf16
    wk2 = _block_diag_taps(w2, Nb)
    g1r = jnp.tile(g1, Nb).reshape(R, 1).astype(jnp.float32)
    b1r = jnp.tile(b1, Nb).reshape(R, 1).astype(jnp.float32)
    g2r = jnp.tile(g2, Nb).reshape(R, 1).astype(jnp.float32)
    b2r = jnp.tile(b2, Nb).reshape(R, 1).astype(jnp.float32)

    # shifted[p] = x[p + dy*W + dx]  =>  roll by -(dy*W + dx) (mod HWp)
    shifts = tuple((-(dy * W + dx)) % HWp for dy, dx in _tap_offsets())
    kernel = functools.partial(_residual_block_kernel,
                               shifts=shifts, inv_hw=1.0 / HW, r=R)

    footprint = _step_vmem_bytes(R, HWp, mask_isize)
    vmem_limit = int(min(max(32 << 20, footprint * 3 // 2),
                         max(cap - (16 << 20), 16 << 20)))

    full = lambda shape: pl.BlockSpec(shape, lambda g: (0,) * len(shape))

    out = pl.pallas_call(
        kernel,
        out_shape=jax.ShapeDtypeStruct((G, R, HWp), jnp.float32),
        grid_spec=pltpu.PrefetchScalarGridSpec(
            num_scalar_prefetch=0,
            grid=(G,),
            in_specs=[
                pl.BlockSpec((1, R, HWp), lambda g: (g, 0, 0)),   # x block
                full((9, HWp)),                                   # tap masks
                full((R, 9 * R)),                                 # conv1 weights
                full((R, 9 * R)),                                 # conv2 weights
                full((R, 1)), full((R, 1)),                       # gamma1, beta1
                full((R, 1)), full((R, 1)),                       # gamma2, beta2
            ],
            out_specs=pl.BlockSpec((1, R, HWp), lambda g: (g, 0, 0)),
            scratch_shapes=[pltpu.VMEM((9 * R, HWp), jnp.bfloat16)],
        ),
        compiler_params=pltpu.CompilerParams(
            dimension_semantics=("parallel",),
            vmem_limit_bytes=vmem_limit),
    )(x, mask, wk1, wk2, g1r, b1r, g2r, b2r)

    out = out.reshape(N, C, HWp)[:, :, :HW]
    return out.reshape(N, C, H, W)


# ----------------------------------------------------------------------------
# Reference + tests.
# ----------------------------------------------------------------------------
def _reference(x, w1, w2, g1, b1, g2, b2):
    """Pure-JAX f32 reference (matches PyTorch ResidualBlock semantics)."""
    def conv(inp, w):
        return lax.conv_general_dilated(
            inp, w, (1, 1), ((1, 1), (1, 1)),
            dimension_numbers=("NCHW", "OIHW", "NCHW"),
            precision=lax.Precision.HIGHEST)

    def inorm(y, g, b):
        mean = jnp.mean(y, axis=(2, 3), keepdims=True)
        var = jnp.mean((y - mean) ** 2, axis=(2, 3), keepdims=True)
        return (y - mean) * lax.rsqrt(var + EPS) * g[None, :, None, None] \
            + b[None, :, None, None]

    y = jnp.maximum(inorm(conv(x, w1), g1, b1), 0.0)
    y = inorm(conv(y, w2), g2, b2)
    return x + y


def _run_case(key, N, C, H, W):
    kx, k1, k2, k3, k4, k5, k6 = jax.random.split(key, 7)
    x = jax.random.normal(kx, (N, C, H, W), jnp.float32)
    w1 = 0.1 * jax.random.normal(k1, (C, C, 3, 3), jnp.float32)
    w2 = 0.1 * jax.random.normal(k2, (C, C, 3, 3), jnp.float32)
    g1 = 1.0 + 0.1 * jax.random.normal(k3, (C,), jnp.float32)
    b1 = 0.1 * jax.random.normal(k4, (C,), jnp.float32)
    g2 = 1.0 + 0.1 * jax.random.normal(k5, (C,), jnp.float32)
    b2 = 0.1 * jax.random.normal(k6, (C,), jnp.float32)

    out = jax.block_until_ready(residual_block(x, w1, w2, g1, b1, g2, b2))
    ref = jax.block_until_ready(_reference(x, w1, w2, g1, b1, g2, b2))
    # Accuracy contract: bf16 MXU operands (f32 accumulation) through two
    # convs + InstanceNorms -> ~1e-2 relative error.
    np.testing.assert_allclose(np.asarray(out), np.asarray(ref),
                               rtol=5e-2, atol=5e-2)


if __name__ == "__main__":
    root = jax.random.PRNGKey(0)
    k_a, k_b, k_c = jax.random.split(root, 3)
    # Primary case from the module spec.
    _run_case(k_a, N=2, C=4, H=16, W=16)
    # H*W not a multiple of 128 -> exercises the padded-lane / tap-mask path.
    _run_case(k_b, N=2, C=4, H=9, W=11)
    # Larger batch -> exercises G > 1 (multi-step grid, resident weights/masks).
    _run_case(k_c, N=128, C=4, H=8, W=8)
    print("KERNEL_OK")
</pallas_src>

<mosaic_0001>
module attributes {stable_mosaic.version = 11 : i64} {
  func.func @_residual_block_kernel(%arg0: i32, %arg1: memref<1x8x256xf32, #tpu.memory_space<vmem>>, %arg2: memref<9x256xf32, #tpu.memory_space<vmem>>, %arg3: memref<8x72xbf16, #tpu.memory_space<vmem>>, %arg4: memref<8x72xbf16, #tpu.memory_space<vmem>>, %arg5: memref<8x1xf32, #tpu.memory_space<vmem>>, %arg6: memref<8x1xf32, #tpu.memory_space<vmem>>, %arg7: memref<8x1xf32, #tpu.memory_space<vmem>>, %arg8: memref<8x1xf32, #tpu.memory_space<vmem>>, %arg9: memref<1x8x256xf32, #tpu.memory_space<vmem>>, %arg10: memref<72x256xbf16, #tpu.memory_space<vmem>>) attributes {dimension_semantics = [#tpu.dimension_semantics<parallel>], iteration_bounds = array<i64: 1>, scalar_prefetch = 0 : i64, scratch_operands = 1 : i64, tpu.core_type = #tpu.core_type<tc>, window_params = [{transform_indices = @transform_0, window_bounds = array<i64: 1, 8, 256>}, {pipeline_mode = #tpu.pipeline_mode<synchronous>, transform_indices = @transform_1, window_bounds = array<i64: 9, 256>}, {pipeline_mode = #tpu.pipeline_mode<synchronous>, transform_indices = @transform_2, window_bounds = array<i64: 8, 72>}, {pipeline_mode = #tpu.pipeline_mode<synchronous>, transform_indices = @transform_3, window_bounds = array<i64: 8, 72>}, {pipeline_mode = #tpu.pipeline_mode<synchronous>, transform_indices = @transform_4, window_bounds = array<i64: 8, 1>}, {pipeline_mode = #tpu.pipeline_mode<synchronous>, transform_indices = @transform_5, window_bounds = array<i64: 8, 1>}, {pipeline_mode = #tpu.pipeline_mode<synchronous>, transform_indices = @transform_6, window_bounds = array<i64: 8, 1>}, {pipeline_mode = #tpu.pipeline_mode<synchronous>, transform_indices = @transform_7, window_bounds = array<i64: 8, 1>}, {transform_indices = @transform_8, window_bounds = array<i64: 1, 8, 256>}]} {
    %c0 = arith.constant 0 : index
    %c0_0 = arith.constant 0 : index
    %c0_1 = arith.constant 0 : index
    %0 = vector.load %arg1[%c0, %c0_0, %c0_1] : memref<1x8x256xf32, #tpu.memory_space<vmem>>, vector<1x8x256xf32>
    %1 = vector.shape_cast %0 : vector<1x8x256xf32> to vector<8x256xf32>
    %c0_2 = arith.constant 0 : index
    %c0_3 = arith.constant 0 : index
    %2 = vector.load %arg2[%c0_2, %c0_3] : memref<9x256xf32, #tpu.memory_space<vmem>>, vector<9x256xf32>
    %c17_i32 = arith.constant 17 : i32
    %3 = tpu.dynamic_rotate %1 by %c17_i32 dim 1 : vector<8x256xf32>, i32 -> vector<8x256xf32>
    %4 = vector.extract_strided_slice %2 {offsets = [0, 0], sizes = [1, 256], strides = [1, 1]} : vector<9x256xf32> to vector<1x256xf32>
    %5 = vector.broadcast %4 : vector<1x256xf32> to vector<8x256xf32>
    %6 = arith.mulf %3, %5 : vector<8x256xf32>
    %7 = arith.truncf %6 : vector<8x256xf32> to vector<8x256xbf16>
    %c0_4 = arith.constant 0 : index
    %c0_5 = arith.constant 0 : index
    %8 = vector.load %arg10[%c0_4, %c0_5] : memref<72x256xbf16, #tpu.memory_space<vmem>>, vector<8x256xbf16>
    tpu.vector_store %arg10[%c0_4, %c0_5], %7 {strides = array<i32>} : memref<72x256xbf16, #tpu.memory_space<vmem>>, vector<8x256xbf16>,
    %c16_i32 = arith.constant 16 : i32
    %9 = tpu.dynamic_rotate %1 by %c16_i32 dim 1 : vector<8x256xf32>, i32 -> vector<8x256xf32>
    %10 = vector.extract_strided_slice %2 {offsets = [1, 0], sizes = [1, 256], strides = [1, 1]} : vector<9x256xf32> to vector<1x256xf32>
    %11 = vector.broadcast %10 : vector<1x256xf32> to vector<8x256xf32>
    %12 = arith.mulf %9, %11 : vector<8x256xf32>
    %13 = arith.truncf %12 : vector<8x256xf32> to vector<8x256xbf16>
    %c8 = arith.constant 8 : index
    %c0_6 = arith.constant 0 : index
    %14 = vector.load %arg10[%c8, %c0_6] : memref<72x256xbf16, #tpu.memory_space<vmem>>, vector<8x256xbf16>
    tpu.vector_store %arg10[%c8, %c0_6], %13 {strides = array<i32>} : memref<72x256xbf16, #tpu.memory_space<vmem>>, vector<8x256xbf16>,
    %c15_i32 = arith.constant 15 : i32
    %15 = tpu.dynamic_rotate %1 by %c15_i32 dim 1 : vector<8x256xf32>, i32 -> vector<8x256xf32>
    %16 = vector.extract_strided_slice %2 {offsets = [2, 0], sizes = [1, 256], strides = [1, 1]} : vector<9x256xf32> to vector<1x256xf32>
    %17 = vector.broadcast %16 : vector<1x256xf32> to vector<8x256xf32>
    %18 = arith.mulf %15, %17 : vector<8x256xf32>
    %19 = arith.truncf %18 : vector<8x256xf32> to vector<8x256xbf16>
    %c16 = arith.constant 16 : index
    %c0_7 = arith.constant 0 : index
    %20 = vector.load %arg10[%c16, %c0_7] : memref<72x256xbf16, #tpu.memory_space<vmem>>, vector<8x256xbf16>
    tpu.vector_store %arg10[%c16, %c0_7], %19 {strides = array<i32>} : memref<72x256xbf16, #tpu.memory_space<vmem>>, vector<8x256xbf16>,
    %c1_i32 = arith.constant 1 : i32
    %21 = tpu.dynamic_rotate %1 by %c1_i32 dim 1 : vector<8x256xf32>, i32 -> vector<8x256xf32>
    %22 = vector.extract_strided_slice %2 {offsets = [3, 0], sizes = [1, 256], strides = [1, 1]} : vector<9x256xf32> to vector<1x256xf32>
    %23 = vector.broadcast %22 : vector<1x256xf32> to vector<8x256xf32>
    %24 = arith.mulf %21, %23 : vector<8x256xf32>
    %25 = arith.truncf %24 : vector<8x256xf32> to vector<8x256xbf16>
    %c24 = arith.constant 24 : index
    %c0_8 = arith.constant 0 : index
    %26 = vector.load %arg10[%c24, %c0_8] : memref<72x256xbf16, #tpu.memory_space<vmem>>, vector<8x256xbf16>
    tpu.vector_store %arg10[%c24, %c0_8], %25 {strides = array<i32>} : memref<72x256xbf16, #tpu.memory_space<vmem>>, vector<8x256xbf16>,
    %27 = vector.extract_strided_slice %2 {offsets = [4, 0], sizes = [1, 256], strides = [1, 1]} : vector<9x256xf32> to vector<1x256xf32>
    %28 = vector.broadcast %27 : vector<1x256xf32> to vector<8x256xf32>
    %29 = arith.mulf %1, %28 : vector<8x256xf32>
    %30 = arith.truncf %29 : vector<8x256xf32> to vector<8x256xbf16>
    %c32 = arith.constant 32 : index
    %c0_9 = arith.constant 0 : index
    %31 = vector.load %arg10[%c32, %c0_9] : memref<72x256xbf16, #tpu.memory_space<vmem>>, vector<8x256xbf16>
    tpu.vector_store %arg10[%c32, %c0_9], %30 {strides = array<i32>} : memref<72x256xbf16, #tpu.memory_space<vmem>>, vector<8x256xbf16>,
    %c255_i32 = arith.constant 255 : i32
    %32 = tpu.dynamic_rotate %1 by %c255_i32 dim 1 : vector<8x256xf32>, i32 -> vector<8x256xf32>
    %33 = vector.extract_strided_slice %2 {offsets = [5, 0], sizes = [1, 256], strides = [1, 1]} : vector<9x256xf32> to vector<1x256xf32>
    %34 = vector.broadcast %33 : vector<1x256xf32> to vector<8x256xf32>
    %35 = arith.mulf %32, %34 : vector<8x256xf32>
    %36 = arith.truncf %35 : vector<8x256xf32> to vector<8x256xbf16>
    %c40 = arith.constant 40 : index
    %c0_10 = arith.constant 0 : index
    %37 = vector.load %arg10[%c40, %c0_10] : memref<72x256xbf16, #tpu.memory_space<vmem>>, vector<8x256xbf16>
    tpu.vector_store %arg10[%c40, %c0_10], %36 {strides = array<i32>} : memref<72x256xbf16, #tpu.memory_space<vmem>>, vector<8x256xbf16>,
    %c241_i32 = arith.constant 241 : i32
    %38 = tpu.dynamic_rotate %1 by %c241_i32 dim 1 : vector<8x256xf32>, i32 -> vector<8x256xf32>
    %39 = vector.extract_strided_slice %2 {offsets = [6, 0], sizes = [1, 256], strides = [1, 1]} : vector<9x256xf32> to vector<1x256xf32>
    %40 = vector.broadcast %39 : vector<1x256xf32> to vector<8x256xf32>
    %41 = arith.mulf %38, %40 : vector<8x256xf32>
    %42 = arith.truncf %41 : vector<8x256xf32> to vector<8x256xbf16>
    %c48 = arith.constant 48 : index
    %c0_11 = arith.constant 0 : index
    %43 = vector.load %arg10[%c48, %c0_11] : memref<72x256xbf16, #tpu.memory_space<vmem>>, vector<8x256xbf16>
    tpu.vector_store %arg10[%c48, %c0_11], %42 {strides = array<i32>} : memref<72x256xbf16, #tpu.memory_space<vmem>>, vector<8x256xbf16>,
    %c240_i32 = arith.constant 240 : i32
    %44 = tpu.dynamic_rotate %1 by %c240_i32 dim 1 : vector<8x256xf32>, i32 -> vector<8x256xf32>
    %45 = vector.extract_strided_slice %2 {offsets = [7, 0], sizes = [1, 256], strides = [1, 1]} : vector<9x256xf32> to vector<1x256xf32>
    %46 = vector.broadcast %45 : vector<1x256xf32> to vector<8x256xf32>
    %47 = arith.mulf %44, %46 : vector<8x256xf32>
    %48 = arith.truncf %47 : vector<8x256xf32> to vector<8x256xbf16>
    %c56 = arith.constant 56 : index
    %c0_12 = arith.constant 0 : index
    %49 = vector.load %arg10[%c56, %c0_12] : memref<72x256xbf16, #tpu.memory_space<vmem>>, vector<8x256xbf16>
    tpu.vector_store %arg10[%c56, %c0_12], %48 {strides = array<i32>} : memref<72x256xbf16, #tpu.memory_space<vmem>>, vector<8x256xbf16>,
    %c239_i32 = arith.constant 239 : i32
    %50 = tpu.dynamic_rotate %1 by %c239_i32 dim 1 : vector<8x256xf32>, i32 -> vector<8x256xf32>
    %51 = vector.extract_strided_slice %2 {offsets = [8, 0], sizes = [1, 256], strides = [1, 1]} : vector<9x256xf32> to vector<1x256xf32>
    %52 = vector.broadcast %51 : vector<1x256xf32> to vector<8x256xf32>
    %53 = arith.mulf %50, %52 : vector<8x256xf32>
    %54 = arith.truncf %53 : vector<8x256xf32> to vector<8x256xbf16>
    %c64 = arith.constant 64 : index
    %c0_13 = arith.constant 0 : index
    %55 = vector.load %arg10[%c64, %c0_13] : memref<72x256xbf16, #tpu.memory_space<vmem>>, vector<8x256xbf16>
    tpu.vector_store %arg10[%c64, %c0_13], %54 {strides = array<i32>} : memref<72x256xbf16, #tpu.memory_space<vmem>>, vector<8x256xbf16>,
    %c0_14 = arith.constant 0 : index
    %c0_15 = arith.constant 0 : index
    %56 = vector.load %arg3[%c0_14, %c0_15] : memref<8x72xbf16, #tpu.memory_space<vmem>>, vector<8x72xbf16>
    %c0_16 = arith.constant 0 : index
    %c0_17 = arith.constant 0 : index
    %57 = vector.load %arg10[%c0_16, %c0_17] : memref<72x256xbf16, #tpu.memory_space<vmem>>, vector<72x256xbf16>
    %cst = arith.constant dense<0.000000e+00> : vector<8x256xf32>
    %58 = tpu.matmul %56, %57, %cst {dimension_numbers = #tpu.dot_dimension_numbers<[1], [0], [0], [1], [0, 0, 1, 1], [], []>} : vector<8x72xbf16>, vector<72x256xbf16>, vector<8x256xf32> -> vector<8x256xf32>
    %c0_18 = arith.constant 0 : index
    %c0_19 = arith.constant 0 : index
    %59 = vector.load %arg5[%c0_18, %c0_19] : memref<8x1xf32, #tpu.memory_space<vmem>>, vector<8x1xf32>
    %c0_20 = arith.constant 0 : index
    %c0_21 = arith.constant 0 : index
    %60 = vector.load %arg6[%c0_20, %c0_21] : memref<8x1xf32, #tpu.memory_space<vmem>>, vector<8x1xf32>
    %cst_22 = arith.constant dense<0.000000e+00> : vector<8xf32>
    %61 = vector.multi_reduction <add>, %58, %cst_22 [1] : vector<8x256xf32> to vector<8xf32>
    %62 = vector.shape_cast %61 : vector<8xf32> to vector<8x1xf32>
    %63 = arith.mulf %58, %58 : vector<8x256xf32>
    %cst_23 = arith.constant dense<0.000000e+00> : vector<8xf32>
    %64 = vector.multi_reduction <add>, %63, %cst_23 [1] : vector<8x256xf32> to vector<8xf32>
    %65 = vector.shape_cast %64 : vector<8xf32> to vector<8x1xf32>
    %cst_24 = arith.constant 3.906250e-03 : f32
    %66 = vector.broadcast %cst_24 : f32 to vector<8x1xf32>
    %67 = arith.mulf %62, %66 : vector<8x1xf32>
    %cst_25 = arith.constant 3.906250e-03 : f32
    %68 = vector.broadcast %cst_25 : f32 to vector<8x1xf32>
    %69 = arith.mulf %65, %68 : vector<8x1xf32>
    %70 = arith.mulf %67, %67 : vector<8x1xf32>
    %71 = arith.subf %69, %70 : vector<8x1xf32>
    %cst_26 = arith.constant 0.000000e+00 : f32
    %72 = vector.broadcast %cst_26 : f32 to vector<8x1xf32>
    %73 = arith.maximumf %71, %72 : vector<8x1xf32>
    %cst_27 = arith.constant 9.99999974E-6 : f32
    %74 = vector.broadcast %cst_27 : f32 to vector<8x1xf32>
    %75 = arith.addf %73, %74 : vector<8x1xf32>
    %76 = math.rsqrt %75 : vector<8x1xf32>
    %77 = arith.mulf %59, %76 : vector<8x1xf32>
    %78 = arith.mulf %67, %77 : vector<8x1xf32>
    %79 = arith.subf %60, %78 : vector<8x1xf32>
    %80 = vector.broadcast %77 : vector<8x1xf32> to vector<8x256xf32>
    %81 = arith.mulf %58, %80 : vector<8x256xf32>
    %82 = vector.broadcast %79 : vector<8x1xf32> to vector<8x256xf32>
    %83 = arith.addf %81, %82 : vector<8x256xf32>
    %cst_28 = arith.constant 0.000000e+00 : f32
    %84 = vector.broadcast %cst_28 : f32 to vector<8x256xf32>
    %85 = arith.maximumf %83, %84 : vector<8x256xf32>
    %c17_i32_29 = arith.constant 17 : i32
    %86 = tpu.dynamic_rotate %85 by %c17_i32_29 dim 1 : vector<8x256xf32>, i32 -> vector<8x256xf32>
    %87 = vector.extract_strided_slice %2 {offsets = [0, 0], sizes = [1, 256], strides = [1, 1]} : vector<9x256xf32> to vector<1x256xf32>
    %88 = vector.broadcast %87 : vector<1x256xf32> to vector<8x256xf32>
    %89 = arith.mulf %86, %88 : vector<8x256xf32>
    %90 = arith.truncf %89 : vector<8x256xf32> to vector<8x256xbf16>
    %c0_30 = arith.constant 0 : index
    %c0_31 = arith.constant 0 : index
    %91 = vector.load %arg10[%c0_30, %c0_31] : memref<72x256xbf16, #tpu.memory_space<vmem>>, vector<8x256xbf16>
    tpu.vector_store %arg10[%c0_30, %c0_31], %90 {strides = array<i32>} : memref<72x256xbf16, #tpu.memory_space<vmem>>, vector<8x256xbf16>,
    %c16_i32_32 = arith.constant 16 : i32
    %92 = tpu.dynamic_rotate %85 by %c16_i32_32 dim 1 : vector<8x256xf32>, i32 -> vector<8x256xf32>
    %93 = vector.extract_strided_slice %2 {offsets = [1, 0], sizes = [1, 256], strides = [1, 1]} : vector<9x256xf32> to vector<1x256xf32>
    %94 = vector.broadcast %93 : vector<1x256xf32> to vector<8x256xf32>
    %95 = arith.mulf %92, %94 : vector<8x256xf32>
    %96 = arith.truncf %95 : vector<8x256xf32> to vector<8x256xbf16>
    %c8_33 = arith.constant 8 : index
    %c0_34 = arith.constant 0 : index
    %97 = vector.load %arg10[%c8_33, %c0_34] : memref<72x256xbf16, #tpu.memory_space<vmem>>, vector<8x256xbf16>
    tpu.vector_store %arg10[%c8_33, %c0_34], %96 {strides = array<i32>} : memref<72x256xbf16, #tpu.memory_space<vmem>>, vector<8x256xbf16>,
    %c15_i32_35 = arith.constant 15 : i32
    %98 = tpu.dynamic_rotate %85 by %c15_i32_35 dim 1 : vector<8x256xf32>, i32 -> vector<8x256xf32>
    %99 = vector.extract_strided_slice %2 {offsets = [2, 0], sizes = [1, 256], strides = [1, 1]} : vector<9x256xf32> to vector<1x256xf32>
    %100 = vector.broadcast %99 : vector<1x256xf32> to vector<8x256xf32>
    %101 = arith.mulf %98, %100 : vector<8x256xf32>
    %102 = arith.truncf %101 : vector<8x256xf32> to vector<8x256xbf16>
    %c16_36 = arith.constant 16 : index
    %c0_37 = arith.constant 0 : index
    %103 = vector.load %arg10[%c16_36, %c0_37] : memref<72x256xbf16, #tpu.memory_space<vmem>>, vector<8x256xbf16>
    tpu.vector_store %arg10[%c16_36, %c0_37], %102 {strides = array<i32>} : memref<72x256xbf16, #tpu.memory_space<vmem>>, vector<8x256xbf16>,
    %c1_i32_38 = arith.constant 1 : i32
    %104 = tpu.dynamic_rotate %85 by %c1_i32_38 dim 1 : vector<8x256xf32>, i32 -> vector<8x256xf32>
    %105 = vector.extract_strided_slice %2 {offsets = [3, 0], sizes = [1, 256], strides = [1, 1]} : vector<9x256xf32> to vector<1x256xf32>
    %106 = vector.broadcast %105 : vector<1x256xf32> to vector<8x256xf32>
    %107 = arith.mulf %104, %106 : vector<8x256xf32>
    %108 = arith.truncf %107 : vector<8x256xf32> to vector<8x256xbf16>
    %c24_39 = arith.constant 24 : index
    %c0_40 = arith.constant 0 : index
    %109 = vector.load %arg10[%c24_39, %c0_40] : memref<72x256xbf16, #tpu.memory_space<vmem>>, vector<8x256xbf16>
    tpu.vector_store %arg10[%c24_39, %c0_40], %108 {strides = array<i32>} : memref<72x256xbf16, #tpu.memory_space<vmem>>, vector<8x256xbf16>,
    %110 = vector.extract_strided_slice %2 {offsets = [4, 0], sizes = [1, 256], strides = [1, 1]} : vector<9x256xf32> to vector<1x256xf32>
    %111 = vector.broadcast %110 : vector<1x256xf32> to vector<8x256xf32>
    %112 = arith.mulf %85, %111 : vector<8x256xf32>
    %113 = arith.truncf %112 : vector<8x256xf32> to vector<8x256xbf16>
    %c32_41 = arith.constant 32 : index
    %c0_42 = arith.constant 0 : index
    %114 = vector.load %arg10[%c32_41, %c0_42] : memref<72x256xbf16, #tpu.memory_space<vmem>>, vector<8x256xbf16>
    tpu.vector_store %arg10[%c32_41, %c0_42], %113 {strides = array<i32>} : memref<72x256xbf16, #tpu.memory_space<vmem>>, vector<8x256xbf16>,
    %c255_i32_43 = arith.constant 255 : i32
    %115 = tpu.dynamic_rotate %85 by %c255_i32_43 dim 1 : vector<8x256xf32>, i32 -> vector<8x256xf32>
    %116 = vector.extract_strided_slice %2 {offsets = [5, 0], sizes = [1, 256], strides = [1, 1]} : vector<9x256xf32> to vector<1x256xf32>
    %117 = vector.broadcast %116 : vector<1x256xf32> to vector<8x256xf32>
    %118 = arith.mulf %115, %117 : vector<8x256xf32>
    %119 = arith.truncf %118 : vector<8x256xf32> to vector<8x256xbf16>
    %c40_44 = arith.constant 40 : index
    %c0_45 = arith.constant 0 : index
    %120 = vector.load %arg10[%c40_44, %c0_45] : memref<72x256xbf16, #tpu.memory_space<vmem>>, vector<8x256xbf16>
    tpu.vector_store %arg10[%c40_44, %c0_45], %119 {strides = array<i32>} : memref<72x256xbf16, #tpu.memory_space<vmem>>, vector<8x256xbf16>,
    %c241_i32_46 = arith.constant 241 : i32
    %121 = tpu.dynamic_rotate %85 by %c241_i32_46 dim 1 : vector<8x256xf32>, i32 -> vector<8x256xf32>
    %122 = vector.extract_strided_slice %2 {offsets = [6, 0], sizes = [1, 256], strides = [1, 1]} : vector<9x256xf32> to vector<1x256xf32>
    %123 = vector.broadcast %122 : vector<1x256xf32> to vector<8x256xf32>
    %124 = arith.mulf %121, %123 : vector<8x256xf32>
    %125 = arith.truncf %124 : vector<8x256xf32> to vector<8x256xbf16>
    %c48_47 = arith.constant 48 : index
    %c0_48 = arith.constant 0 : index
    %126 = vector.load %arg10[%c48_47, %c0_48] : memref<72x256xbf16, #tpu.memory_space<vmem>>, vector<8x256xbf16>
    tpu.vector_store %arg10[%c48_47, %c0_48], %125 {strides = array<i32>} : memref<72x256xbf16, #tpu.memory_space<vmem>>, vector<8x256xbf16>,
    %c240_i32_49 = arith.constant 240 : i32
    %127 = tpu.dynamic_rotate %85 by %c240_i32_49 dim 1 : vector<8x256xf32>, i32 -> vector<8x256xf32>
    %128 = vector.extract_strided_slice %2 {offsets = [7, 0], sizes = [1, 256], strides = [1, 1]} : vector<9x256xf32> to vector<1x256xf32>
    %129 = vector.broadcast %128 : vector<1x256xf32> to vector<8x256xf32>
    %130 = arith.mulf %127, %129 : vector<8x256xf32>
    %131 = arith.truncf %130 : vector<8x256xf32> to vector<8x256xbf16>
    %c56_50 = arith.constant 56 : index
    %c0_51 = arith.constant 0 : index
    %132 = vector.load %arg10[%c56_50, %c0_51] : memref<72x256xbf16, #tpu.memory_space<vmem>>, vector<8x256xbf16>
    tpu.vector_store %arg10[%c56_50, %c0_51], %131 {strides = array<i32>} : memref<72x256xbf16, #tpu.memory_space<vmem>>, vector<8x256xbf16>,
    %c239_i32_52 = arith.constant 239 : i32
    %133 = tpu.dynamic_rotate %85 by %c239_i32_52 dim 1 : vector<8x256xf32>, i32 -> vector<8x256xf32>
    %134 = vector.extract_strided_slice %2 {offsets = [8, 0], sizes = [1, 256], strides = [1, 1]} : vector<9x256xf32> to vector<1x256xf32>
    %135 = vector.broadcast %134 : vector<1x256xf32> to vector<8x256xf32>
    %136 = arith.mulf %133, %135 : vector<8x256xf32>
    %137 = arith.truncf %136 : vector<8x256xf32> to vector<8x256xbf16>
    %c64_53 = arith.constant 64 : index
    %c0_54 = arith.constant 0 : index
    %138 = vector.load %arg10[%c64_53, %c0_54] : memref<72x256xbf16, #tpu.memory_space<vmem>>, vector<8x256xbf16>
    tpu.vector_store %arg10[%c64_53, %c0_54], %137 {strides = array<i32>} : memref<72x256xbf16, #tpu.memory_space<vmem>>, vector<8x256xbf16>,
    %c0_55 = arith.constant 0 : index
    %c0_56 = arith.constant 0 : index
    %139 = vector.load %arg4[%c0_55, %c0_56] : memref<8x72xbf16, #tpu.memory_space<vmem>>, vector<8x72xbf16>
    %c0_57 = arith.constant 0 : index
    %c0_58 = arith.constant 0 : index
    %140 = vector.load %arg10[%c0_57, %c0_58] : memref<72x256xbf16, #tpu.memory_space<vmem>>, vector<72x256xbf16>
    %cst_59 = arith.constant dense<0.000000e+00> : vector<8x256xf32>
    %141 = tpu.matmul %139, %140, %cst_59 {dimension_numbers = #tpu.dot_dimension_numbers<[1], [0], [0], [1], [0, 0, 1, 1], [], []>} : vector<8x72xbf16>, vector<72x256xbf16>, vector<8x256xf32> -> vector<8x256xf32>
    %c0_60 = arith.constant 0 : index
    %c0_61 = arith.constant 0 : index
    %142 = vector.load %arg7[%c0_60, %c0_61] : memref<8x1xf32, #tpu.memory_space<vmem>>, vector<8x1xf32>
    %c0_62 = arith.constant 0 : index
    %c0_63 = arith.constant 0 : index
    %143 = vector.load %arg8[%c0_62, %c0_63] : memref<8x1xf32, #tpu.memory_space<vmem>>, vector<8x1xf32>
    %cst_64 = arith.constant dense<0.000000e+00> : vector<8xf32>
    %144 = vector.multi_reduction <add>, %141, %cst_64 [1] : vector<8x256xf32> to vector<8xf32>
    %145 = vector.shape_cast %144 : vector<8xf32> to vector<8x1xf32>
    %146 = arith.mulf %141, %141 : vector<8x256xf32>
    %cst_65 = arith.constant dense<0.000000e+00> : vector<8xf32>
    %147 = vector.multi_reduction <add>, %146, %cst_65 [1] : vector<8x256xf32> to vector<8xf32>
    %148 = vector.shape_cast %147 : vector<8xf32> to vector<8x1xf32>
    %cst_66 = arith.constant 3.906250e-03 : f32
    %149 = vector.broadcast %cst_66 : f32 to vector<8x1xf32>
    %150 = arith.mulf %145, %149 : vector<8x1xf32>
    %cst_67 = arith.constant 3.906250e-03 : f32
    %151 = vector.broadcast %cst_67 : f32 to vector<8x1xf32>
    %152 = arith.mulf %148, %151 : vector<8x1xf32>
    %153 = arith.mulf %150, %150 : vector<8x1xf32>
    %154 = arith.subf %152, %153 : vector<8x1xf32>
    %cst_68 = arith.constant 0.000000e+00 : f32
    %155 = vector.broadcast %cst_68 : f32 to vector<8x1xf32>
    %156 = arith.maximumf %154, %155 : vector<8x1xf32>
    %cst_69 = arith.constant 9.99999974E-6 : f32
    %157 = vector.broadcast %cst_69 : f32 to vector<8x1xf32>
    %158 = arith.addf %156, %157 : vector<8x1xf32>
    %159 = math.rsqrt %158 : vector<8x1xf32>
    %160 = arith.mulf %142, %159 : vector<8x1xf32>
    %161 = arith.mulf %150, %160 : vector<8x1xf32>
    %162 = arith.subf %143, %161 : vector<8x1xf32>
    %163 = vector.broadcast %160 : vector<8x1xf32> to vector<8x256xf32>
    %164 = arith.mulf %141, %163 : vector<8x256xf32>
    %165 = vector.broadcast %162 : vector<8x1xf32> to vector<8x256xf32>
    %166 = arith.addf %164, %165 : vector<8x256xf32>
    %167 = arith.addf %1, %166 : vector<8x256xf32>
    %c0_70 = arith.constant 0 : index
    %c0_71 = arith.constant 0 : index
    %c0_72 = arith.constant 0 : index
    %168 = vector.load %arg9[%c0_70, %c0_71, %c0_72] : memref<1x8x256xf32, #tpu.memory_space<vmem>>, vector<1x8x256xf32>
    %169 = vector.shape_cast %168 : vector<1x8x256xf32> to vector<8x256xf32>
    %170 = vector.shape_cast %167 : vector<8x256xf32> to vector<1x8x256xf32>
    tpu.vector_store %arg9[%c0_70, %c0_71, %c0_72], %170 {strides = array<i32>} : memref<1x8x256xf32, #tpu.memory_space<vmem>>, vector<1x8x256xf32>,
    return
  }
  func.func @transform_0(%arg0: i32) -> (i32, i32, i32) {
    %c0_i32 = arith.constant 0 : i32
    %c0_i32_0 = arith.constant 0 : i32
    %c0_i32_1 = arith.constant 0 : i32
    return %arg0, %c0_i32, %c0_i32_0 : i32, i32, i32
  }
  func.func @transform_1(%arg0: i32) -> (i32, i32) {
    %c0_i32 = arith.constant 0 : i32
    %c0_i32_0 = arith.constant 0 : i32
    %c0_i32_1 = arith.constant 0 : i32
    return %c0_i32, %c0_i32_0 : i32, i32
  }
  func.func @transform_2(%arg0: i32) -> (i32, i32) {
    %c0_i32 = arith.constant 0 : i32
    %c0_i32_0 = arith.constant 0 : i32
    %c0_i32_1 = arith.constant 0 : i32
    return %c0_i32, %c0_i32_0 : i32, i32
  }
  func.func @transform_3(%arg0: i32) -> (i32, i32) {
    %c0_i32 = arith.constant 0 : i32
    %c0_i32_0 = arith.constant 0 : i32
    %c0_i32_1 = arith.constant 0 : i32
    return %c0_i32, %c0_i32_0 : i32, i32
  }
  func.func @transform_4(%arg0: i32) -> (i32, i32) {
    %c0_i32 = arith.constant 0 : i32
    %c0_i32_0 = arith.constant 0 : i32
    %c0_i32_1 = arith.constant 0 : i32
    return %c0_i32, %c0_i32_0 : i32, i32
  }
  func.func @transform_5(%arg0: i32) -> (i32, i32) {
    %c0_i32 = arith.constant 0 : i32
    %c0_i32_0 = arith.constant 0 : i32
    %c0_i32_1 = arith.constant 0 : i32
    return %c0_i32, %c0_i32_0 : i32, i32
  }
  func.func @transform_6(%arg0: i32) -> (i32, i32) {
    %c0_i32 = arith.constant 0 : i32
    %c0_i32_0 = arith.constant 0 : i32
    %c0_i32_1 = arith.constant 0 : i32
    return %c0_i32, %c0_i32_0 : i32, i32
  }
  func.func @transform_7(%arg0: i32) -> (i32, i32) {
    %c0_i32 = arith.constant 0 : i32
    %c0_i32_0 = arith.constant 0 : i32
    %c0_i32_1 = arith.constant 0 : i32
    return %c0_i32, %c0_i32_0 : i32, i32
  }
  func.func @transform_8(%arg0: i32) -> (i32, i32, i32) {
    %c0_i32 = arith.constant 0 : i32
    %c0_i32_0 = arith.constant 0 : i32
    %c0_i32_1 = arith.constant 0 : i32
    return %arg0, %c0_i32, %c0_i32_0 : i32, i32, i32
  }
}

</mosaic_0001>

<llo_original>
// kernel: tile.23
$region0: #{tile.23}
  #allocation0 [shape = 's32[1]{0}', space=sflag, size = 0x4, scoped, tag = 'scoped memory for tile.23']
  %s0 = inlined_call_operand.vmem [shape: f32[4], index: 0, kind: input, shape index: {}]
  %s1 = inlined_call_operand.vmem [shape: f32[2,4], index: 1, kind: output, shape index: {}]
  // Predicated region
  $region2: #{tile.23} parent=0 // pred_check
    _
  $region3: #{tile.23} parent=0 // pred_check_branch
    %3 = sbr.rel (0) target = $region5
  $region4: #{tile.23} parent=0 // pred_region
    _
  $region5: #{tile.23} parent=0 // pred_fallthru
    _
  %v4 = vld [vmem:[%s0] ss:$0 sm:$0xff]
  %5 = vst [vmem:[%s1] sm:$0x3] %v4

// kernel: tile.0
$region0: #{tile.0}
  %s0 = inlined_call_operand.vmem [shape: f32[2,4], index: 0, kind: input, shape index: {}]
  %s1 = inlined_call_operand.vmem [shape: f32[8,1], index: 1, kind: output, shape index: {}]
  $region1: #{tile.0} parent=0
    #allocation0 [shape = 'u8[4096]{0}', space=vmem, size = 0x1000, scoped, tag = 'scoped mem for input reshape']
    %s3 = sshll.u32 1, 2
    %s4 = ssub.s32 %s3, 1
    %v5 = vld [vmem:[%s0] sm:%s4]
    %6 = vst [vmem:[#allocation0] sm:%s4] %v5
    %v7 = vld [vmem:[#allocation0] sm:$0x3]
    %vm8 = vcmask 7168
    %9 = vst.msk [vmem:[%s1] ss:$4 sm:$0x3] %vm8, %v7
    %v10 = vld [vmem:[#allocation0] sm:$0x3]
    %11 = vrot.lane.b32.xlu0 %v10, 127
    %v12 = vpop.permute.xlu0 %11
    %vm13 = vcmask 7168
    %s14 = scalar_lea.vmem %s1, 1
    %15 = vst.msk [vmem:[%s14] ss:$4 sm:$0x3] %vm13, %v12
    %v16 = vld [vmem:[#allocation0] sm:$0x3]
    %17 = vrot.lane.b32.xlu0 %v16, 126
    %v18 = vpop.permute.xlu0 %17
    %vm19 = vcmask 7168
    %s20 = scalar_lea.vmem %s1, 2
    %21 = vst.msk [vmem:[%s20] ss:$4 sm:$0x3] %vm19, %v18
    %v22 = vld [vmem:[#allocation0] sm:$0x3]
    %23 = vrot.lane.b32.xlu0 %v22, 125
    %v24 = vpop.permute.xlu0 %23
    %vm25 = vcmask 7168
    %s26 = scalar_lea.vmem %s1, 3
    %27 = vst.msk [vmem:[%s26] ss:$4 sm:$0x3] %vm25, %v24

// kernel: residual_block.1
$region0: #{residual_block.1}
  #allocation0 [shape = 'u32[]', space=smem, size = 0x4, offset = 0x4, fixed_abs, tag = 'smem constant byte address 0x4 - core index']
  #allocation1 [shape = 'u32[144,128]{1,0:T(1,128)}', space=vmem, size = 0x12000, scoped, tag = 'internal scratch']
  #allocation2 [shape = 'bf16[72,256]{1,0:T(8,128)(2,1)}', space=vmem, size = 0x9000, scoped, tag = 'scratch operand']
  %s0 = inlined_call_operand.vmem [shape: f32[1,8,256], index: 0, kind: input, shape index: {}]
  %s1 = inlined_call_operand.vmem [shape: f32[9,256], index: 1, kind: input, shape index: {}]
  %s2 = inlined_call_operand.vmem [shape: bf16[8,72], index: 2, kind: input, shape index: {}]
  %s3 = inlined_call_operand.vmem [shape: bf16[8,72], index: 3, kind: input, shape index: {}]
  %s4 = inlined_call_operand.vmem [shape: f32[8,1], index: 4, kind: input, shape index: {}]
  %s5 = inlined_call_operand.vmem [shape: f32[8,1], index: 5, kind: input, shape index: {}]
  %s6 = inlined_call_operand.vmem [shape: f32[8,1], index: 6, kind: input, shape index: {}]
  %s7 = inlined_call_operand.vmem [shape: f32[8,1], index: 7, kind: input, shape index: {}]
  %s8 = inlined_call_operand.vmem [shape: f32[1,8,256], index: 8, kind: output, shape index: {}]
  %s9 = sld [smem:[#allocation0]]
  $region42: #{residual_block.1} parent=0
    _
  %s11 = ssub.s32 1, %s9
  %s12 = scalar_select 0, %s11, %s9
  // Predicated region
  $region2: #{residual_block.1} parent=0 // pred_check
    _
  $region3: #{residual_block.1} parent=0 // pred_check_branch
    %14 = sbr.rel (0) target = $region5
  $region4: #{residual_block.1} parent=0 // pred_region
    _
  $region5: #{residual_block.1} parent=0 // pred_fallthru
    _
  // Predicated region
  $region6: #{residual_block.1} parent=0 // pred_check
    _
  $region7: #{residual_block.1} parent=0 // pred_check_branch
    %16 = sbr.rel (0) target = $region9
  $region8: #{residual_block.1} parent=0 // pred_region
    _
  $region9: #{residual_block.1} parent=0 // pred_fallthru
    _
  // Predicated region
  $region10: #{residual_block.1} parent=0 // pred_check
    _
  $region11: #{residual_block.1} parent=0 // pred_check_branch
    %18 = sbr.rel (0) target = $region13
  $region12: #{residual_block.1} parent=0 // pred_region
    _
  $region13: #{residual_block.1} parent=0 // pred_fallthru
    _
  // Predicated region
  $region14: #{residual_block.1} parent=0 // pred_check
    _
  $region15: #{residual_block.1} parent=0 // pred_check_branch
    %20 = sbr.rel (0) target = $region17
  $region16: #{residual_block.1} parent=0 // pred_region
    _
  $region17: #{residual_block.1} parent=0 // pred_fallthru
    _
  // Predicated region
  $region18: #{residual_block.1} parent=0 // pred_check
    _
  $region19: #{residual_block.1} parent=0 // pred_check_branch
    %22 = sbr.rel (0) target = $region21
  $region20: #{residual_block.1} parent=0 // pred_region
    _
  $region21: #{residual_block.1} parent=0 // pred_fallthru
    _
  // Predicated region
  $region22: #{residual_block.1} parent=0 // pred_check
    _
  $region23: #{residual_block.1} parent=0 // pred_check_branch
    %24 = sbr.rel (0) target = $region25
  $region24: #{residual_block.1} parent=0 // pred_region
    _
  $region25: #{residual_block.1} parent=0 // pred_fallthru
    _
  // Predicated region
  $region26: #{residual_block.1} parent=0 // pred_check
    _
  $region27: #{residual_block.1} parent=0 // pred_check_branch
    %26 = sbr.rel (0) target = $region29
  $region28: #{residual_block.1} parent=0 // pred_region
    _
  $region29: #{residual_block.1} parent=0 // pred_fallthru
    _
  // Predicated region
  $region30: #{residual_block.1} parent=0 // pred_check
    _
  $region31: #{residual_block.1} parent=0 // pred_check_branch
    %28 = sbr.rel (0) target = $region33
  $region32: #{residual_block.1} parent=0 // pred_region
    _
  $region33: #{residual_block.1} parent=0 // pred_fallthru
    _
  %v30 = vld [vmem:[%s0] sm:$0xff]
  %v31 = vld [vmem:[%s0 + $0x8] sm:$0xff]
  %v32 = vld [vmem:[%s1] sm:$0xff]
  %v33 = vld [vmem:[%s1 + $0x8] sm:$0xff]
  %v34 = vld [vmem:[%s1 + $0x10] sm:$0x1]
  %v35 = vld [vmem:[%s1 + $0x18] sm:$0x1]
  %36 = vrot.lane.b32.xlu0 %v30, 17
  %v37 = vpop.permute.xlu0 %36
  %38 = vrot.lane.b32.xlu0 %v31, 17
  %v39 = vpop.permute.xlu0 %38
  %v40 = vlaneseq
  %v41 = vand.u32 %v40, 127
  %vm42 = vcmp.lt.s32.totalorder %v41, 17
  %v43 = vsel %vm42, %v37, %v39
  %v44 = vsel %vm42, %v39, %v37
  %v45 = vlaneseq
  %v46 = vshrl.u32 %v45, 7
  %v47 = vsub.s32 0, %v46
  %v48 = vrot.slane %v32, %v47
  %v49 = vlaneseq
  %v50 = vshrl.u32 %v49, 7
  %v51 = vsub.s32 0, %v50
  %v52 = vrot.slane %v33, %v51
  %v53 = vmul.f32 %v44, %v48
  %v54 = vmul.f32 %v43, %v52
  %v55 = vpack.c.bf16 %v53, %v53
  %v56 = vpack.c.bf16 %v54, %v54
  %v59 = vunpack.c.l.b16 %v55
  %v60 = vunpack.c.l.b16 %v56
  %v61 = vpack.c.b16 %v60, %v59
  %63 = vst [vmem:[#allocation2] sm:$0xff] %v61
  %64 = vrot.lane.b32.xlu0 %v30, 16
  %v65 = vpop.permute.xlu0 %64
  %66 = vrot.lane.b32.xlu0 %v31, 16
  %v67 = vpop.permute.xlu0 %66
  %vm68 = vcmp.lt.s32.totalorder %v41, 16
  %v69 = vsel %vm68, %v65, %v67
  %v70 = vsel %vm68, %v67, %v65
  %v71 = vlaneseq
  %v72 = vshrl.u32 %v71, 7
  %v73 = vsub.s32 1, %v72
  %v74 = vrot.slane %v32, %v73
  %v75 = vlaneseq
  %v76 = vshrl.u32 %v75, 7
  %v77 = vsub.s32 1, %v76
  %v78 = vrot.slane %v33, %v77
  %v79 = vmul.f32 %v70, %v74
  %v80 = vmul.f32 %v69, %v78
  %v81 = vpack.c.bf16 %v79, %v79
  %v82 = vpack.c.bf16 %v80, %v80
  %v85 = vunpack.c.l.b16 %v81
  %v86 = vunpack.c.l.b16 %v82
  %v87 = vpack.c.b16 %v86, %v85
  %89 = vst [vmem:[#allocation2 + $0x8] sm:$0xff] %v87
  %90 = vrot.lane.b32.xlu0 %v30, 15
  %v91 = vpop.permute.xlu0 %90
  %92 = vrot.lane.b32.xlu0 %v31, 15
  %v93 = vpop.permute.xlu0 %92
  %vm94 = vcmp.lt.s32.totalorder %v41, 15
  %v95 = vsel %vm94, %v91, %v93
  %v96 = vsel %vm94, %v93, %v91
  %v97 = vlaneseq
  %v98 = vshrl.u32 %v97, 7
  %v99 = vsub.s32 2, %v98
  %v100 = vrot.slane %v32, %v99
  %v101 = vlaneseq
  %v102 = vshrl.u32 %v101, 7
  %v103 = vsub.s32 2, %v102
  %v104 = vrot.slane %v33, %v103
  %v105 = vmul.f32 %v96, %v100
  %v106 = vmul.f32 %v95, %v104
  %v107 = vpack.c.bf16 %v105, %v105
  %v108 = vpack.c.bf16 %v106, %v106
  %v111 = vunpack.c.l.b16 %v107
  %v112 = vunpack.c.l.b16 %v108
  %v113 = vpack.c.b16 %v112, %v111
  %115 = vst [vmem:[#allocation2 + $0x10] sm:$0xff] %v113
  %116 = vrot.lane.b32.xlu0 %v30, 1
  %v117 = vpop.permute.xlu0 %116
  %118 = vrot.lane.b32.xlu0 %v31, 1
  %v119 = vpop.permute.xlu0 %118
  %vm120 = vcmp.lt.s32.totalorder %v41, 1
  %v121 = vsel %vm120, %v117, %v119
  %v122 = vsel %vm120, %v119, %v117
  %v123 = vlaneseq
  %v124 = vshrl.u32 %v123, 7
  %v125 = vsub.s32 3, %v124
  %v126 = vrot.slane %v32, %v125
  %v127 = vlaneseq
  %v128 = vshrl.u32 %v127, 7
  %v129 = vsub.s32 3, %v128
  %v130 = vrot.slane %v33, %v129
  %v131 = vmul.f32 %v122, %v126
  %v132 = vmul.f32 %v121, %v130
  %v133 = vpack.c.bf16 %v131, %v131
  %v134 = vpack.c.bf16 %v132, %v132
  %v137 = vunpack.c.l.b16 %v133
  %v138 = vunpack.c.l.b16 %v134
  %v139 = vpack.c.b16 %v138, %v137
  %141 = vst [vmem:[#allocation2 + $0x18] sm:$0xff] %v139
  %v142 = vlaneseq
  %v143 = vshrl.u32 %v142, 7
  %v144 = vsub.s32 4, %v143
  %v145 = vrot.slane %v32, %v144
  %v146 = vlaneseq
  %v147 = vshrl.u32 %v146, 7
  %v148 = vsub.s32 4, %v147
  %v149 = vrot.slane %v33, %v148
  %v150 = vmul.f32 %v30, %v145
  %v151 = vmul.f32 %v31, %v149
  %v152 = vpack.c.bf16 %v150, %v150
  %v153 = vpack.c.bf16 %v151, %v151
  %v156 = vunpack.c.l.b16 %v152
  %v157 = vunpack.c.l.b16 %v153
  %v158 = vpack.c.b16 %v157, %v156
  %160 = vst [vmem:[#allocation2 + $0x20] sm:$0xff] %v158
  %161 = vrot.lane.b32.xlu0 %v30, 127
  %v162 = vpop.permute.xlu0 %161
  %163 = vrot.lane.b32.xlu0 %v31, 127
  %v164 = vpop.permute.xlu0 %163
  %vm165 = vcmp.lt.s32.totalorder %v41, 127
  %v166 = vsel %vm165, %v162, %v164
  %v167 = vsel %vm165, %v164, %v162
  %v168 = vlaneseq
  %v169 = vshrl.u32 %v168, 7
  %v170 = vsub.s32 5, %v169
  %v171 = vrot.slane %v32, %v170
  %v172 = vlaneseq
  %v173 = vshrl.u32 %v172, 7
  %v174 = vsub.s32 5, %v173
  %v175 = vrot.slane %v33, %v174
  %v176 = vmul.f32 %v166, %v171
  %v177 = vmul.f32 %v167, %v175
  %v178 = vpack.c.bf16 %v176, %v176
  %v179 = vpack.c.bf16 %v177, %v177
  %v182 = vunpack.c.l.b16 %v178
  %v183 = vunpack.c.l.b16 %v179
  %v184 = vpack.c.b16 %v183, %v182
  %186 = vst [vmem:[#allocation2 + $0x28] sm:$0xff] %v184
  %187 = vrot.lane.b32.xlu0 %v30, 113
  %v188 = vpop.permute.xlu0 %187
  %189 = vrot.lane.b32.xlu0 %v31, 113
  %v190 = vpop.permute.xlu0 %189
  %vm191 = vcmp.lt.s32.totalorder %v41, 113
  %v192 = vsel %vm191, %v188, %v190
  %v193 = vsel %vm191, %v190, %v188
  %v194 = vlaneseq
  %v195 = vshrl.u32 %v194, 7
  %v196 = vsub.s32 6, %v195
  %v197 = vrot.slane %v32, %v196
  %v198 = vlaneseq
  %v199 = vshrl.u32 %v198, 7
  %v200 = vsub.s32 6, %v199
  %v201 = vrot.slane %v33, %v200
  %v202 = vmul.f32 %v192, %v197
  %v203 = vmul.f32 %v193, %v201
  %v204 = vpack.c.bf16 %v202, %v202
  %v205 = vpack.c.bf16 %v203, %v203
  %v208 = vunpack.c.l.b16 %v204
  %v209 = vunpack.c.l.b16 %v205
  %v210 = vpack.c.b16 %v209, %v208
  %212 = vst [vmem:[#allocation2 + $0x30] sm:$0xff] %v210
  %213 = vrot.lane.b32.xlu0 %v30, 112
  %v214 = vpop.permute.xlu0 %213
  %215 = vrot.lane.b32.xlu0 %v31, 112
  %v216 = vpop.permute.xlu0 %215
  %vm217 = vcmp.lt.s32.totalorder %v41, 112
  %v218 = vsel %vm217, %v214, %v216
  %v219 = vsel %vm217, %v216, %v214
  %v220 = vlaneseq
  %v221 = vshrl.u32 %v220, 7
  %v222 = vsub.s32 7, %v221
  %v223 = vrot.slane %v32, %v222
  %v224 = vlaneseq
  %v225 = vshrl.u32 %v224, 7
  %v226 = vsub.s32 7, %v225
  %v227 = vrot.slane %v33, %v226
  %v228 = vmul.f32 %v218, %v223
  %v229 = vmul.f32 %v219, %v227
  %v230 = vpack.c.bf16 %v228, %v228
  %v231 = vpack.c.bf16 %v229, %v229
  %v234 = vunpack.c.l.b16 %v230
  %v235 = vunpack.c.l.b16 %v231
  %v236 = vpack.c.b16 %v235, %v234
  %238 = vst [vmem:[#allocation2 + $0x38] sm:$0xff] %v236
  %239 = vrot.lane.b32.xlu0 %v30, 111
  %v240 = vpop.permute.xlu0 %239
  %241 = vrot.lane.b32.xlu0 %v31, 111
  %v242 = vpop.permute.xlu0 %241
  %vm243 = vcmp.lt.s32.totalorder %v41, 111
  %v244 = vsel %vm243, %v240, %v242
  %v245 = vsel %vm243, %v242, %v240
  %v246 = vlaneseq
  %v247 = vshrl.u32 %v246, 7
  %v248 = vsub.s32 0, %v247
  %v249 = vrot.slane %v34, %v248
  %v250 = vlaneseq
  %v251 = vshrl.u32 %v250, 7
  %v252 = vsub.s32 0, %v251
  %v253 = vrot.slane %v35, %v252
  %v254 = vmul.f32 %v244, %v249
  %v255 = vmul.f32 %v245, %v253
  %v256 = vpack.c.bf16 %v254, %v254
  %v257 = vpack.c.bf16 %v255, %v255
  %v260 = vunpack.c.l.b16 %v256
  %v261 = vunpack.c.l.b16 %v257
  %v262 = vpack.c.b16 %v261, %v260
  %264 = vst [vmem:[#allocation2 + $0x40] sm:$0xff] %v262
  %v265 = vld [vmem:[%s2] sm:$0xf]
  %v266 = vld [vmem:[#allocation2] sm:$0xff]
  %v267 = vld [vmem:[#allocation2 + $0x8] sm:$0xff]
  %v268 = vld [vmem:[#allocation2 + $0x10] sm:$0xff]
  %v269 = vld [vmem:[#allocation2 + $0x18] sm:$0xff]
  %v270 = vld [vmem:[#allocation2 + $0x20] sm:$0xff]
  %v271 = vld [vmem:[#allocation2 + $0x28] sm:$0xff]
  %v272 = vld [vmem:[#allocation2 + $0x30] sm:$0xff]
  %v273 = vld [vmem:[#allocation2 + $0x38] sm:$0xff]
  %v274 = vld [vmem:[#allocation2 + $0x40] sm:$0xff]
  %v284 = vunpack.c.l.b16 %v266
  %v285 = vunpack.c.h.b16 %v266
  %v286 = vunpack.c.l.b16 %v267
  %v287 = vunpack.c.h.b16 %v267
  %v288 = vunpack.c.l.b16 %v268
  %v289 = vunpack.c.h.b16 %v268
  %v290 = vunpack.c.l.b16 %v269
  %v291 = vunpack.c.h.b16 %v269
  %v292 = vunpack.c.l.b16 %v270
  %v293 = vunpack.c.h.b16 %v270
  %v294 = vunpack.c.l.b16 %v271
  %v295 = vunpack.c.h.b16 %v271
  %v296 = vunpack.c.l.b16 %v272
  %v297 = vunpack.c.h.b16 %v272
  %v298 = vunpack.c.l.b16 %v273
  %v299 = vunpack.c.h.b16 %v273
  %v300 = vunpack.c.l.b16 %v274
  %v301 = vunpack.c.h.b16 %v274
  %v302 = vpack.c.b16 %v286, %v284
  %v303 = vpack.c.b16 %v287, %v285
  %v304 = vpack.c.b16 %v290, %v288
  %v305 = vpack.c.b16 %v291, %v289
  %v306 = vpack.c.b16 %v294, %v292
  %v307 = vpack.c.b16 %v295, %v293
  %v308 = vpack.c.b16 %v298, %v296
  %v309 = vpack.c.b16 %v299, %v297
  %v310 = vpack.c.b16 %v300, %v300
  %v311 = vpack.c.b16 %v301, %v301
  %vm320 = vcmask 588800
  %v322 = vsel %vm320, %v265, 0
  %vm324 = vcmask 1043456
  %v326 = vsel %vm324, %v310, 0
  %v329 = vsel %vm324, %v311, 0
  %331 = vmatprep.subr.bf16.mxu0 0
  %332 = vmatpush1.bf16.msra.mxu0 0
  %333 = vmatprep.subr.bf16.mxu0 0
  %334 = vmatpush1.bf16.msra.mxu0 0
  %335 = vmatprep.subr.bf16.mxu0 0
  %336 = vmatpush1.bf16.msra.mxu0 0
  %337 = vmatprep.subr.bf16.mxu0 %v329
  %338 = vmatpush1.bf16.msra.mxu0 %v326
  %339 = vmatprep.subr.bf16.mxu0 %v309
  %340 = vmatpush1.bf16.msra.mxu0 %v308
  %341 = vmatprep.subr.bf16.mxu0 %v307
  %342 = vmatpush1.bf16.msra.mxu0 %v306
  %343 = vmatprep.subr.bf16.mxu0 %v305
  %344 = vmatpush1.bf16.msra.mxu0 %v304
  %345 = vmatprep.subr.bf16.mxu0 %v303
  %346 = vmatpush1.bf16.msra.mxu0 %v302
  %347 = vmatprep.subr.bf16.mxu0 0
  %348 = vmatpush2.bf16.msra.mxu0 0
  %349 = vmatprep.subr.bf16.mxu0 0
  %350 = vmatpush2.bf16.msra.mxu0 0
  %351 = vmatprep.subr.bf16.mxu0 0
  %352 = vmatpush2.bf16.msra.mxu0 0
  %353 = vmatprep.subr.bf16.mxu0 0
  %354 = vmatpush2.bf16.msra.mxu0 0
  %355 = vmatprep.subr.bf16.mxu0 0
  %356 = vmatpush2.bf16.msra.mxu0 0
  %357 = vmatprep.subr.bf16.mxu0 0
  %358 = vmatpush2.bf16.msra.mxu0 0
  %359 = vmatprep.subr.bf16.mxu0 0
  %360 = vmatpush2.bf16.msra.mxu0 0
  %361 = vmatprep.subr.bf16.mxu0 0
  %362 = vmatpush2.bf16.msra.mxu0 0
  %363 = vmatprep.mubr.bf16.mxu0 0
  %364 = vmatmul.mubr.bf16.gmra.mxu0 %v322
  %v365 = vpop.f32.mrf.mxu0
  %v366 = vadd.f32 0.0, %v365
  %v367 = vpop.f32.mrf.mxu0
  %v368 = vadd.f32 0.0, %v367
  %v369 = vpop.f32.mrf.mxu0
  %v370 = vpop.f32.mrf.mxu0
  %371 = vdwg.mxu0
  %v372 = vld [vmem:[%s4] sm:$0xff]
  %v373 = vld [vmem:[%s5] sm:$0xff]
  %v374 = vadd.f32 %v366, %v368
  %375 = vadd.xlane.f32.xlu0 %v374
  %v376 = vpop.xlane.xlu0 %375
  %v377 = vmul.f32 %v366, %v366
  %v378 = vmul.f32 %v368, %v368
  %v379 = vadd.f32 %v377, %v378
  %380 = vadd.xlane.f32.xlu0 %v379
  %v381 = vpop.xlane.xlu0 %380
  %v382 = vmul.f32 %v376, 0.00390625
  %v383 = vmul.f32 %v381, 0.00390625
  %v384 = vmul.f32 %v382, %v382
  %v385 = vsub.f32 %v383, %v384
  %v386 = vmax.f32 %v385, 0.0
  %v387 = vadd.f32 %v386, 1e-05
  %v388 = vrsqrt.pop %v387
  %v389 = vmul.f32 %v372, %v388
  %v390 = vmul.f32 %v382, %v389
  %v391 = vsub.f32 %v373, %v390
  %393 = vset.pattern.permute.xlu0 0
  %394 = vperm.xlu0 %393, %v389
  %v395 = vpop.permute.xlu0 %394
  %v397 = vmul.f32 %v366, %v395
  %v398 = vmul.f32 %v368, %v395
  %400 = vset.pattern.permute.xlu0 0
  %401 = vperm.xlu0 %400, %v391
  %v402 = vpop.permute.xlu0 %401
  %v404 = vadd.f32 %v397, %v402
  %v405 = vadd.f32 %v398, %v402
  %v406 = vmax.f32 %v404, 0.0
  %v407 = vmax.f32 %v405, 0.0
  %408 = vrot.lane.b32.xlu0 %v406, 17
  %v409 = vpop.permute.xlu0 %408
  %410 = vrot.lane.b32.xlu0 %v407, 17
  %v411 = vpop.permute.xlu0 %410
  %v412 = vsel %vm42, %v409, %v411
  %v413 = vsel %vm42, %v411, %v409
  %v414 = vmul.f32 %v413, %v48
  %v415 = vmul.f32 %v412, %v52
  %v416 = vpack.c.bf16 %v414, %v414
  %v417 = vpack.c.bf16 %v415, %v415
  %v420 = vunpack.c.l.b16 %v416
  %v421 = vunpack.c.l.b16 %v417
  %v422 = vpack.c.b16 %v421, %v420
  %424 = vst [vmem:[#allocation2] sm:$0xff] %v422
  %425 = vrot.lane.b32.xlu0 %v406, 16
  %v426 = vpop.permute.xlu0 %425
  %427 = vrot.lane.b32.xlu0 %v407, 16
  %v428 = vpop.permute.xlu0 %427
  %v429 = vsel %vm68, %v426, %v428
  %v430 = vsel %vm68, %v428, %v426
  %v431 = vmul.f32 %v430, %v74
  %v432 = vmul.f32 %v429, %v78
  %v433 = vpack.c.bf16 %v431, %v431
  %v434 = vpack.c.bf16 %v432, %v432
  %v437 = vunpack.c.l.b16 %v433
  %v438 = vunpack.c.l.b16 %v434
  %v439 = vpack.c.b16 %v438, %v437
  %441 = vst [vmem:[#allocation2 + $0x8] sm:$0xff] %v439
  %442 = vrot.lane.b32.xlu0 %v406, 15
  %v443 = vpop.permute.xlu0 %442
  %444 = vrot.lane.b32.xlu0 %v407, 15
  %v445 = vpop.permute.xlu0 %444
  %v446 = vsel %vm94, %v443, %v445
  %v447 = vsel %vm94, %v445, %v443
  %v448 = vmul.f32 %v447, %v100
  %v449 = vmul.f32 %v446, %v104
  %v450 = vpack.c.bf16 %v448, %v448
  %v451 = vpack.c.bf16 %v449, %v449
  %v454 = vunpack.c.l.b16 %v450
  %v455 = vunpack.c.l.b16 %v451
  %v456 = vpack.c.b16 %v455, %v454
  %458 = vst [vmem:[#allocation2 + $0x10] sm:$0xff] %v456
  %459 = vrot.lane.b32.xlu0 %v406, 1
  %v460 = vpop.permute.xlu0 %459
  %461 = vrot.lane.b32.xlu0 %v407, 1
  %v462 = vpop.permute.xlu0 %461
  %v463 = vsel %vm120, %v460, %v462
  %v464 = vsel %vm120, %v462, %v460
  %v465 = vmul.f32 %v464, %v126
  %v466 = vmul.f32 %v463, %v130
  %v467 = vpack.c.bf16 %v465, %v465
  %v468 = vpack.c.bf16 %v466, %v466
  %v471 = vunpack.c.l.b16 %v467
  %v472 = vunpack.c.l.b16 %v468
  %v473 = vpack.c.b16 %v472, %v471
  %475 = vst [vmem:[#allocation2 + $0x18] sm:$0xff] %v473
  %v476 = vmul.f32 %v406, %v145
  %v477 = vmul.f32 %v407, %v149
  %v478 = vpack.c.bf16 %v476, %v476
  %v479 = vpack.c.bf16 %v477, %v477
  %v482 = vunpack.c.l.b16 %v478
  %v483 = vunpack.c.l.b16 %v479
  %v484 = vpack.c.b16 %v483, %v482
  %486 = vst [vmem:[#allocation2 + $0x20] sm:$0xff] %v484
  %487 = vrot.lane.b32.xlu0 %v406, 127
  %v488 = vpop.permute.xlu0 %487
  %489 = vrot.lane.b32.xlu0 %v407, 127
  %v490 = vpop.permute.xlu0 %489
  %v491 = vsel %vm165, %v488, %v490
  %v492 = vsel %vm165, %v490, %v488
  %v493 = vmul.f32 %v491, %v171
  %v494 = vmul.f32 %v492, %v175
  %v495 = vpack.c.bf16 %v493, %v493
  %v496 = vpack.c.bf16 %v494, %v494
  %v499 = vunpack.c.l.b16 %v495
  %v500 = vunpack.c.l.b16 %v496
  %v501 = vpack.c.b16 %v500, %v499
  %503 = vst [vmem:[#allocation2 + $0x28] sm:$0xff] %v501
  %504 = vrot.lane.b32.xlu0 %v406, 113
  %v505 = vpop.permute.xlu0 %504
  %506 = vrot.lane.b32.xlu0 %v407, 113
  %v507 = vpop.permute.xlu0 %506
  %v508 = vsel %vm191, %v505, %v507
  %v509 = vsel %vm191, %v507, %v505
  %v510 = vmul.f32 %v508, %v197
  %v511 = vmul.f32 %v509, %v201
  %v512 = vpack.c.bf16 %v510, %v510
  %v513 = vpack.c.bf16 %v511, %v511
  %v516 = vunpack.c.l.b16 %v512
  %v517 = vunpack.c.l.b16 %v513
  %v518 = vpack.c.b16 %v517, %v516
  %520 = vst [vmem:[#allocation2 + $0x30] sm:$0xff] %v518
  %521 = vrot.lane.b32.xlu0 %v406, 112
  %v522 = vpop.permute.xlu0 %521
  %523 = vrot.lane.b32.xlu0 %v407, 112
  %v524 = vpop.permute.xlu0 %523
  %v525 = vsel %vm217, %v522, %v524
  %v526 = vsel %vm217, %v524, %v522
  %v527 = vmul.f32 %v525, %v223
  %v528 = vmul.f32 %v526, %v227
  %v529 = vpack.c.bf16 %v527, %v527
  %v530 = vpack.c.bf16 %v528, %v528
  %v533 = vunpack.c.l.b16 %v529
  %v534 = vunpack.c.l.b16 %v530
  %v535 = vpack.c.b16 %v534, %v533
  %537 = vst [vmem:[#allocation2 + $0x38] sm:$0xff] %v535
  %538 = vrot.lane.b32.xlu0 %v406, 111
  %v539 = vpop.permute.xlu0 %538
  %540 = vrot.lane.b32.xlu0 %v407, 111
  %v541 = vpop.permute.xlu0 %540
  %v542 = vsel %vm243, %v539, %v541
  %v543 = vsel %vm243, %v541, %v539
  %v544 = vmul.f32 %v542, %v249
  %v545 = vmul.f32 %v543, %v253
  %v546 = vpack.c.bf16 %v544, %v544
  %v547 = vpack.c.bf16 %v545, %v545
  %v550 = vunpack.c.l.b16 %v546
  %v551 = vunpack.c.l.b16 %v547
  %v552 = vpack.c.b16 %v551, %v550
  %554 = vst [vmem:[#allocation2 + $0x40] sm:$0xff] %v552
  %v555 = vld [vmem:[%s3] sm:$0xf]
  %v556 = vld [vmem:[#allocation2] sm:$0xff]
  %v557 = vld [vmem:[#allocation2 + $0x8] sm:$0xff]
  %v558 = vld [vmem:[#allocation2 + $0x10] sm:$0xff]
  %v559 = vld [vmem:[#allocation2 + $0x18] sm:$0xff]
  %v560 = vld [vmem:[#allocation2 + $0x20] sm:$0xff]
  %v561 = vld [vmem:[#allocation2 + $0x28] sm:$0xff]
  %v562 = vld [vmem:[#allocation2 + $0x30] sm:$0xff]
  %v563 = vld [vmem:[#allocation2 + $0x38] sm:$0xff]
  %v564 = vld [vmem:[#allocation2 + $0x40] sm:$0xff]
  %v574 = vunpack.c.l.b16 %v556
  %v575 = vunpack.c.h.b16 %v556
  %v576 = vunpack.c.l.b16 %v557
  %v577 = vunpack.c.h.b16 %v557
  %v578 = vunpack.c.l.b16 %v558
  %v579 = vunpack.c.h.b16 %v558
  %v580 = vunpack.c.l.b16 %v559
  %v581 = vunpack.c.h.b16 %v559
  %v582 = vunpack.c.l.b16 %v560
  %v583 = vunpack.c.h.b16 %v560
  %v584 = vunpack.c.l.b16 %v561
  %v585 = vunpack.c.h.b16 %v561
  %v586 = vunpack.c.l.b16 %v562
  %v587 = vunpack.c.h.b16 %v562
  %v588 = vunpack.c.l.b16 %v563
  %v589 = vunpack.c.h.b16 %v563
  %v590 = vunpack.c.l.b16 %v564
  %v591 = vunpack.c.h.b16 %v564
  %v592 = vpack.c.b16 %v576, %v574
  %v593 = vpack.c.b16 %v577, %v575
  %v594 = vpack.c.b16 %v580, %v578
  %v595 = vpack.c.b16 %v581, %v579
  %v596 = vpack.c.b16 %v584, %v582
  %v597 = vpack.c.b16 %v585, %v583
  %v598 = vpack.c.b16 %v588, %v586
  %v599 = vpack.c.b16 %v589, %v587
  %v600 = vpack.c.b16 %v590, %v590
  %v601 = vpack.c.b16 %v591, %v591
  %v611 = vsel %vm320, %v555, 0
  %v614 = vsel %vm324, %v600, 0
  %v617 = vsel %vm324, %v601, 0
  %619 = vmatprep.subr.bf16.mxu0 0
  %620 = vmatpush1.bf16.msra.mxu0 0
  %621 = vmatprep.subr.bf16.mxu0 0
  %622 = vmatpush1.bf16.msra.mxu0 0
  %623 = vmatprep.subr.bf16.mxu0 0
  %624 = vmatpush1.bf16.msra.mxu0 0
  %625 = vmatprep.subr.bf16.mxu0 %v617
  %626 = vmatpush1.bf16.msra.mxu0 %v614
  %627 = vmatprep.subr.bf16.mxu0 %v599
  %628 = vmatpush1.bf16.msra.mxu0 %v598
  %629 = vmatprep.subr.bf16.mxu0 %v597
  %630 = vmatpush1.bf16.msra.mxu0 %v596
  %631 = vmatprep.subr.bf16.mxu0 %v595
  %632 = vmatpush1.bf16.msra.mxu0 %v594
  %633 = vmatprep.subr.bf16.mxu0 %v593
  %634 = vmatpush1.bf16.msra.mxu0 %v592
  %635 = vmatprep.subr.bf16.mxu0 0
  %636 = vmatpush2.bf16.msra.mxu0 0
  %637 = vmatprep.subr.bf16.mxu0 0
  %638 = vmatpush2.bf16.msra.mxu0 0
  %639 = vmatprep.subr.bf16.mxu0 0
  %640 = vmatpush2.bf16.msra.mxu0 0
  %641 = vmatprep.subr.bf16.mxu0 0
  %642 = vmatpush2.bf16.msra.mxu0 0
  %643 = vmatprep.subr.bf16.mxu0 0
  %644 = vmatpush2.bf16.msra.mxu0 0
  %645 = vmatprep.subr.bf16.mxu0 0
  %646 = vmatpush2.bf16.msra.mxu0 0
  %647 = vmatprep.subr.bf16.mxu0 0
  %648 = vmatpush2.bf16.msra.mxu0 0
  %649 = vmatprep.subr.bf16.mxu0 0
  %650 = vmatpush2.bf16.msra.mxu0 0
  %651 = vmatprep.mubr.bf16.mxu0 0
  %652 = vmatmul.mubr.bf16.gmra.mxu0 %v611
  %v653 = vpop.f32.mrf.mxu0
  %v654 = vadd.f32 0.0, %v653
  %v655 = vpop.f32.mrf.mxu0
  %v656 = vadd.f32 0.0, %v655
  %v657 = vpop.f32.mrf.mxu0
  %v658 = vpop.f32.mrf.mxu0
  %659 = vdwg.mxu0
  %v660 = vld [vmem:[%s6] sm:$0xff]
  %v661 = vld [vmem:[%s7] sm:$0xff]
  %v662 = vadd.f32 %v654, %v656
  %663 = vadd.xlane.f32.xlu0 %v662
  %v664 = vpop.xlane.xlu0 %663
  %v665 = vmul.f32 %v654, %v654
  %v666 = vmul.f32 %v656, %v656
  %v667 = vadd.f32 %v665, %v666
  %668 = vadd.xlane.f32.xlu0 %v667
  %v669 = vpop.xlane.xlu0 %668
  %v670 = vmul.f32 %v664, 0.00390625
  %v671 = vmul.f32 %v669, 0.00390625
  %v672 = vmul.f32 %v670, %v670
  %v673 = vsub.f32 %v671, %v672
  %v674 = vmax.f32 %v673, 0.0
  %v675 = vadd.f32 %v674, 1e-05
  %v676 = vrsqrt.pop %v675
  %v677 = vmul.f32 %v660, %v676
  %v678 = vmul.f32 %v670, %v677
  %v679 = vsub.f32 %v661, %v678
  %681 = vset.pattern.permute.xlu0 0
  %682 = vperm.xlu0 %681, %v677
  %v683 = vpop.permute.xlu0 %682
  %v685 = vmul.f32 %v654, %v683
  %v686 = vmul.f32 %v656, %v683
  %688 = vset.pattern.permute.xlu0 0
  %689 = vperm.xlu0 %688, %v679
  %v690 = vpop.permute.xlu0 %689
  %v692 = vadd.f32 %v685, %v690
  %v693 = vadd.f32 %v686, %v690
  %v694 = vadd.f32 %v30, %v692
  %v695 = vadd.f32 %v31, %v693
  %696 = vst [vmem:[%s8] sm:$0xff] %v694
  %697 = vst [vmem:[%s8 + $0x8] sm:$0xff] %v695
  // Predicated region
  $region34: #{residual_block.1} parent=0 // pred_check
    _
  $region35: #{residual_block.1} parent=0 // pred_check_branch
    %699 = sbr.rel (0) target = $region37
  $region36: #{residual_block.1} parent=0 // pred_region
    _
  $region37: #{residual_block.1} parent=0 // pred_fallthru
    _
  // Predicated region
  $region38: #{residual_block.1} parent=0 // pred_check
    _
  $region39: #{residual_block.1} parent=0 // pred_check_branch
    %701 = sbr.rel (0) target = $region41
  $region40: #{residual_block.1} parent=0 // pred_region
    _
  $region41: #{residual_block.1} parent=0 // pred_fallthru
    _

</llo_original>
